<compile_context>
chip_gen: v6e
topology: v6e:2x2x1
jax: 0.10.0
libtpu: 0.0.40
codegen_flags: <defaults>
</compile_context>

<pallas_src>
import math

import jax
import jax.numpy as jnp
from jax.experimental import pallas as pl
from jax.experimental.pallas import tpu as pltpu


def _concat_whole_kernel(a_ref, b_ref, o_ref):
    """Fallback: single-block copy (used only when no aligned row tiling exists)."""
    n1 = a_ref.shape[0]
    o_ref[0:n1, :] = a_ref[...]
    o_ref[n1:, :] = b_ref[...]


def _make_tiled_kernel(na_tiles):
    def kernel(a_ref, b_ref, o_ref):
        i = pl.program_id(0)

        @pl.when(i < na_tiles)
        def _():
            o_ref[...] = a_ref[...]

        @pl.when(i >= na_tiles)
        def _():
            o_ref[...] = b_ref[...]

    return kernel


def _sublane_multiple(dtype):
    # Rows per packed sublane group: 8 for 4-byte, 16 for 2-byte, 32 for 1-byte dtypes.
    return max(8, 32 // jnp.dtype(dtype).itemsize)


def _pick_row_tile(n1, n2, sub, d, itemsize,
                   target_rows=512, max_tile_bytes=2 * 1024 * 1024):
    """Largest row tile that is a multiple of `sub`, divides both n1 and n2, and
    keeps one tile under ~2 MiB (3 arrays x 2 buffers < v5e's 16 MiB scoped VMEM).
    Returns None if no such tile exists."""
    g = math.gcd(n1, n2)
    if g <= 0 or g % sub != 0:
        return None
    cap = max(sub, min(target_rows, max_tile_bytes // max(1, d * itemsize)))
    cap = min(cap, g)
    best = None
    t = sub
    while t <= cap:
        if g % t == 0:
            best = t
        t += sub
    return best


def _concat_pallas_2d(a, b):
    """Concat two row-major [N, D] arrays along axis 0 with a Pallas kernel."""
    n1, d = a.shape
    n2, _ = b.shape
    dtype = a.dtype
    itemsize = jnp.dtype(dtype).itemsize
    sub = _sublane_multiple(dtype)
    out_shape = jax.ShapeDtypeStruct((n1 + n2, d), dtype)

    tile = _pick_row_tile(n1, n2, sub, d, itemsize)
    if tile is None:
        # No aligned row tiling possible -> correct single-block copy fallback.
        return pl.pallas_call(
            _concat_whole_kernel,
            out_shape=out_shape,
            in_specs=[
                pl.BlockSpec((n1, d), lambda: (0, 0)),
                pl.BlockSpec((n2, d), lambda: (0, 0)),
            ],
            out_specs=pl.BlockSpec((n1 + n2, d), lambda: (0, 0)),
        )(a, b)

    na_tiles = n1 // tile
    nb_tiles = n2 // tile

    # Clamp the unused input's block index so Pallas skips its DMA when the block
    # index is unchanged between consecutive grid steps.
    a_spec = pl.BlockSpec((tile, d), lambda i: (jnp.minimum(i, na_tiles - 1), 0))
    b_spec = pl.BlockSpec((tile, d), lambda i: (jnp.maximum(i - na_tiles, 0), 0))
    o_spec = pl.BlockSpec((tile, d), lambda i: (i, 0))

    return pl.pallas_call(
        _make_tiled_kernel(na_tiles),
        out_shape=out_shape,
        grid=(na_tiles + nb_tiles,),
        in_specs=[a_spec, b_spec],
        out_specs=o_spec,
        compiler_params=pltpu.CompilerParams(
            dimension_semantics=("parallel",)),  # shard row tiles over v7x's 2 TCs
    )(a, b)


def concatenate(atom_embedding, position_embedding):
    """Pallas equivalent of np.concatenate((atom_embedding, position_embedding), axis=0)."""
    assert atom_embedding.ndim == 2 and position_embedding.ndim == 2
    assert atom_embedding.shape[1] == position_embedding.shape[1]
    assert atom_embedding.dtype == position_embedding.dtype
    n1, d = atom_embedding.shape
    n2, _ = position_embedding.shape
    itemsize = jnp.dtype(atom_embedding.dtype).itemsize
    sub = _sublane_multiple(atom_embedding.dtype)

    # Lane-dense packing: concat of row-major [N, D] arrays along axis 0 equals
    # concat of their flat buffers, so when D < 128 and the bytes retile exactly
    # into 128-wide rows (and that view still admits an aligned row tiling), run
    # the kernel on [*, 128] views so every store uses full 128 lanes.
    if d < 128 and (n1 * d) % 128 == 0 and (n2 * d) % 128 == 0:
        r1, r2 = (n1 * d) // 128, (n2 * d) // 128
        if _pick_row_tile(r1, r2, sub, 128, itemsize) is not None:
            packed = _concat_pallas_2d(atom_embedding.reshape(r1, 128),
                                       position_embedding.reshape(r2, 128))
            return packed.reshape(n1 + n2, d)

    return _concat_pallas_2d(atom_embedding, position_embedding)


if __name__ == "__main__":
    key = jax.random.PRNGKey(0)
    k1, k2, k3, k4, k5, k6 = jax.random.split(key, 6)

    # Case 1: shapes implied by the forward (seq=8, hidden=32) -> tiled path, tile=8.
    a1 = jax.random.normal(k1, (8, 32), dtype=jnp.float32)
    b1 = jax.random.normal(k2, (8, 32), dtype=jnp.float32)
    out1 = jax.block_until_ready(concatenate(a1, b1))
    ref1 = jnp.concatenate((a1, b1), axis=0)
    assert out1.shape == (16, 32)
    assert jnp.array_equal(out1, ref1)

    # Case 2: unequal row counts, lane-aligned hidden -> multi-tile grid across the seam.
    a2 = jax.random.normal(k3, (16, 128), dtype=jnp.float32)
    b2 = jax.random.normal(k4, (24, 128), dtype=jnp.float32)
    out2 = jax.block_until_ready(concatenate(a2, b2))
    ref2 = jnp.concatenate((a2, b2), axis=0)
    assert out2.shape == (40, 128)
    assert jnp.array_equal(out2, ref2)

    # Case 3: narrow hidden dim -> lane-dense [*, 128] packed path.
    a3 = jax.random.normal(k5, (32, 32), dtype=jnp.float32)
    b3 = jax.random.normal(k6, (32, 32), dtype=jnp.float32)
    out3 = jax.block_until_ready(concatenate(a3, b3))
    ref3 = jnp.concatenate((a3, b3), axis=0)
    assert out3.shape == (64, 32)
    assert jnp.array_equal(out3, ref3)

    print("KERNEL_OK")
</pallas_src>

<mosaic_0001>
module attributes {stable_mosaic.version = 11 : i64} {
  func.func @kernel(%arg0: i32, %arg1: memref<8x32xf32, #tpu.memory_space<vmem>>, %arg2: memref<8x32xf32, #tpu.memory_space<vmem>>, %arg3: memref<8x32xf32, #tpu.memory_space<vmem>>) attributes {dimension_semantics = [#tpu.dimension_semantics<parallel>], iteration_bounds = array<i64: 2>, scalar_prefetch = 0 : i64, scratch_operands = 0 : i64, tpu.core_type = #tpu.core_type<tc>, window_params = [{transform_indices = @transform_0, window_bounds = array<i64: 8, 32>}, {transform_indices = @transform_1, window_bounds = array<i64: 8, 32>}, {transform_indices = @transform_2, window_bounds = array<i64: 8, 32>}]} {
    %c1_i32 = arith.constant 1 : i32
    %0 = arith.cmpi slt, %arg0, %c1_i32 : i32
    %1 = arith.extui %0 : i1 to i32
    %c0_i32 = arith.constant 0 : i32
    %2 = arith.cmpi ne, %1, %c0_i32 : i32
    scf.if %2 {
      %c0 = arith.constant 0 : index
      %c0_2 = arith.constant 0 : index
      %6 = vector.load %arg1[%c0, %c0_2] : memref<8x32xf32, #tpu.memory_space<vmem>>, vector<8x32xf32>
      %c0_3 = arith.constant 0 : index
      %c0_4 = arith.constant 0 : index
      %7 = vector.load %arg3[%c0_3, %c0_4] : memref<8x32xf32, #tpu.memory_space<vmem>>, vector<8x32xf32>
      tpu.vector_store %arg3[%c0_3, %c0_4], %6 {strides = array<i32>} : memref<8x32xf32, #tpu.memory_space<vmem>>, vector<8x32xf32>,
    } else {
    }
    %c1_i32_0 = arith.constant 1 : i32
    %3 = arith.cmpi sge, %arg0, %c1_i32_0 : i32
    %4 = arith.extui %3 : i1 to i32
    %c0_i32_1 = arith.constant 0 : i32
    %5 = arith.cmpi ne, %4, %c0_i32_1 : i32
    scf.if %5 {
      %c0 = arith.constant 0 : index
      %c0_2 = arith.constant 0 : index
      %6 = vector.load %arg2[%c0, %c0_2] : memref<8x32xf32, #tpu.memory_space<vmem>>, vector<8x32xf32>
      %c0_3 = arith.constant 0 : index
      %c0_4 = arith.constant 0 : index
      %7 = vector.load %arg3[%c0_3, %c0_4] : memref<8x32xf32, #tpu.memory_space<vmem>>, vector<8x32xf32>
      tpu.vector_store %arg3[%c0_3, %c0_4], %6 {strides = array<i32>} : memref<8x32xf32, #tpu.memory_space<vmem>>, vector<8x32xf32>,
    } else {
    }
    return
  }
  func.func @transform_0(%arg0: i32) -> (i32, i32) {
    %c0_i32 = arith.constant 0 : i32
    %0 = arith.minsi %arg0, %c0_i32 : i32
    %c0_i32_0 = arith.constant 0 : i32
    %c0_i32_1 = arith.constant 0 : i32
    return %0, %c0_i32_0 : i32, i32
  }
  func.func @transform_1(%arg0: i32) -> (i32, i32) {
    %c1_i32 = arith.constant 1 : i32
    %0 = arith.subi %arg0, %c1_i32 : i32
    %c0_i32 = arith.constant 0 : i32
    %1 = arith.maxsi %0, %c0_i32 : i32
    %c0_i32_0 = arith.constant 0 : i32
    %c0_i32_1 = arith.constant 0 : i32
    return %1, %c0_i32_0 : i32, i32
  }
  func.func @transform_2(%arg0: i32) -> (i32, i32) {
    %c0_i32 = arith.constant 0 : i32
    %c0_i32_0 = arith.constant 0 : i32
    return %arg0, %c0_i32 : i32, i32
  }
}

</mosaic_0001>

<llo_original>
// kernel: tpu_custom_call.1
$region0: #{tpu_custom_call.1}
  #allocation0 [shape = 'u32[]', space=smem, size = 0x4, offset = 0x4, fixed_abs, tag = 'smem constant byte address 0x4 - core index']
  #allocation1 [shape = 'u32[144,128]{1,0:T(1,128)}', space=vmem, size = 0x12000, scoped, tag = 'internal scratch']
  %s0 = inlined_call_operand.hbm [shape: f32[8,32], index: 0, kind: input, shape index: {}]
  %s1 = inlined_call_operand.hbm [shape: f32[8,32], index: 1, kind: input, shape index: {}]
  %s2 = inlined_call_operand.hbm [shape: f32[16,32], index: 2, kind: output, shape index: {}]
  %s3 = sld [smem:[#allocation0]]
  $region57: #{tpu_custom_call.1} parent=0
    _
  %s5 = ssub.s32 1, %s3
  %s6 = scalar_select 0, %s5, %s3
  $region1: #{tpu_custom_call.1} parent=0
    #allocation2 [shape = 'u8[8192]{0}', space=vmem, size = 0x2000, scoped, tag = 'input window, operand 0']
    #allocation3 [shape = 's32[2]{0}', space=sflag, size = 0x8, scoped, tag = 'scoped memory for tpu_custom_call.1']
    #allocation4 [shape = 's32[2]{0}', space=sflag, size = 0x8, scoped, tag = 'scoped memory for tpu_custom_call.1']
    #allocation5 [shape = 'u8[8192]{0}', space=vmem, size = 0x2000, scoped, tag = 'input window, operand 1']
    #allocation6 [shape = 's32[2]{0}', space=sflag, size = 0x8, scoped, tag = 'scoped memory for tpu_custom_call.1']
    #allocation7 [shape = 'u8[8192]{0}', space=vmem, size = 0x2000, scoped, tag = 'output window, operand 0']
    %7 = vsyncpa [#allocation3], 0
    %s8 = scalar_lea.sflag [#allocation3], 1
    %9 = vsyncpa %s8, 0
    %10 = vsyncpa [#allocation6], 0
    %s11 = scalar_lea.sflag [#allocation6], 1
    %12 = vsyncpa %s11, 0
    %13 = vsyncpa [#allocation4], 0
    %s14 = scalar_lea.sflag [#allocation4], 1
    %15 = vsyncpa %s14, 0
    loop: start=0, step=1, limit=4
    $region2: #{tpu_custom_call.1} parent=1 // loop_pre_header
      _
    $region3: #{tpu_custom_call.1} parent=1 // loop_header
      %s17 = sphi 0, %s21
      %p18 = scmp.ge.s32.totalorder %s17, 4
      %s31 = sphi 0, %s33
      %s34 = sphi 0, %s31
      %s35 = sphi 0, %s34
      %s51 = sphi 0, %s35
      %s63 = sphi 0, %s65
      %s66 = sphi 0, %s63
      %s67 = sphi 0, %s66
      %s83 = sphi 0, %s67
      %s89 = sphi 0, %s91
      %s92 = sphi 0, %s89
      %s93 = sphi 0, %s92
      %s109 = sphi 0, %s93
    $region4: #{tpu_custom_call.1} parent=1 // loop_header_branch
      %20 = sbr.rel (%p18) target = $region8
    $region5: #{tpu_custom_call.1} parent=1 // loop_body
      %s22 = ssub.s32 %s17, 1
      %s23 = ssub.s32 %s17, 2
      %s24 = sadd.s32 %s17, 1
      %p25 = scmp.lt.s32.totalorder %s17, 0
      %s26 = scalar_select %p25, %s17, 0
      %p27 = scmp.lt.s32.totalorder %s24, 0
      %s28 = scalar_select %p27, %s24, 0
      %s29 = ssub.s32 %s26, %s28
      %p30 = scmp.eq.s32.totalorder %s29, 0
      %s32 = sadd.s32 %s31, 1
      %s33 = scalar_select %p30, %s31, %s32
      %p36 = pneg %p30
      %p37 = scmp.eq.s32.totalorder %s17, 1
      %p38 = por %p36, %p37
      %p39 = scmp.ne.s32.totalorder %s31, %s34
      %p40 = scmp.eq.s32.totalorder %s17, 0
      %p41 = por %p39, %p40
      %p42 = scmp.ne.s32.totalorder %s31, %s34
      %p43 = scmp.eq.s32.totalorder %s22, 1
      %p44 = por %p42, %p43
      %p45 = scmp.ne.s32.totalorder %s34, %s35
      %p46 = scmp.eq.s32.totalorder %s22, 0
      %p47 = por %p45, %p46
      %p48 = scmp.ne.s32.totalorder %s34, %s35
      %p49 = scmp.eq.s32.totalorder %s23, 1
      %p50 = por %p48, %p49
      %p52 = scmp.ne.s32.totalorder %s35, %s51
      %p53 = scmp.eq.s32.totalorder %s23, 0
      %p54 = por %p52, %p53
      %s55 = ssub.s32 %s17, 1
      %p56 = scmp.gt.s32.totalorder %s55, 0
      %s57 = scalar_select %p56, %s55, 0
      %s58 = ssub.s32 %s24, 1
      %p59 = scmp.gt.s32.totalorder %s58, 0
      %s60 = scalar_select %p59, %s58, 0
      %s61 = ssub.s32 %s57, %s60
      %p62 = scmp.eq.s32.totalorder %s61, 0
      %s64 = sadd.s32 %s63, 1
      %s65 = scalar_select %p62, %s63, %s64
      %p68 = pneg %p62
      %p69 = scmp.eq.s32.totalorder %s17, 1
      %p70 = por %p68, %p69
      %p71 = scmp.ne.s32.totalorder %s63, %s66
      %p72 = scmp.eq.s32.totalorder %s17, 0
      %p73 = por %p71, %p72
      %p74 = scmp.ne.s32.totalorder %s63, %s66
      %p75 = scmp.eq.s32.totalorder %s22, 1
      %p76 = por %p74, %p75
      %p77 = scmp.ne.s32.totalorder %s66, %s67
      %p78 = scmp.eq.s32.totalorder %s22, 0
      %p79 = por %p77, %p78
      %p80 = scmp.ne.s32.totalorder %s66, %s67
      %p81 = scmp.eq.s32.totalorder %s23, 1
      %p82 = por %p80, %p81
      %p84 = scmp.ne.s32.totalorder %s67, %s83
      %p85 = scmp.eq.s32.totalorder %s23, 0
      %p86 = por %p84, %p85
      %s87 = ssub.s32 %s17, %s24
      %p88 = scmp.eq.s32.totalorder %s87, 0
      %s90 = sadd.s32 %s89, 1
      %s91 = scalar_select %p88, %s89, %s90
      %p94 = pneg %p88
      %p95 = scmp.eq.s32.totalorder %s17, 1
      %p96 = por %p94, %p95
      %p97 = scmp.ne.s32.totalorder %s89, %s92
      %p98 = scmp.eq.s32.totalorder %s17, 0
      %p99 = por %p97, %p98
      %p100 = scmp.ne.s32.totalorder %s89, %s92
      %p101 = scmp.eq.s32.totalorder %s22, 1
      %p102 = por %p100, %p101
      %p103 = scmp.ne.s32.totalorder %s92, %s93
      %p104 = scmp.eq.s32.totalorder %s22, 0
      %p105 = por %p103, %p104
      %p106 = scmp.ne.s32.totalorder %s92, %s93
      %p107 = scmp.eq.s32.totalorder %s23, 1
      %p108 = por %p106, %p107
      %p110 = scmp.ne.s32.totalorder %s93, %s109
      %p111 = scmp.eq.s32.totalorder %s23, 0
      %p112 = por %p110, %p111
      %p113 = scmp.le.s32.totalorder 1, %s17
      %p114 = scmp.lt.s32.totalorder %s17, 3
      %p115 = pnand %p113, %p114
      %p116 = pneg %p115
      // Predicated region
      $region9: #{tpu_custom_call.1} parent=5 // pred_check
        _
      $region10: #{tpu_custom_call.1} parent=5 // pred_check_branch
        %118 = sbr.rel (%p115) target = $region12
      $region11: #{tpu_custom_call.1} parent=5 // pred_region
        %s119 = ssub.s32 %s17, 1
      $region12: #{tpu_custom_call.1} parent=5 // pred_fallthru
        _
      %p120 = scmp.lt.s32.totalorder %s17, 2
      // Predicated region
      $region13: #{tpu_custom_call.1} parent=5 // pred_check
        %p121 = pneg %p120
      $region14: #{tpu_custom_call.1} parent=5 // pred_check_branch
        %123 = sbr.rel (%p121) target = $region16
      $region15: #{tpu_custom_call.1} parent=5 // pred_region
        // Predicated region
        $region17: #{tpu_custom_call.1} parent=15 // pred_check
          %p124 = pneg %p41
        $region18: #{tpu_custom_call.1} parent=15 // pred_check_branch
          %126 = sbr.rel (%p124) target = $region20
        $region19: #{tpu_custom_call.1} parent=15 // pred_region
          %s127 = sand.u32 %s31, 1
          %s128 = scalar_lea.sflag [#allocation3], %s127
          %s129 = sand.u32 %s31, 1
          %s130 = smul.addr %s129, 8
          %s131 = scalar_lea.vmem [#allocation2], %s130
          %p132 = scmp.lt.s32.totalorder %s17, 0
          %s133 = scalar_select %p132, %s17, 0
          %s135 = ssub.s32 128, 128
          %136 = vsyncadd %s128, %s135
          %s137 = smul.addr %s133, 128
          %s138 = scalar_lea.hbm %s0, %s137
          %s140 = sshll.u32 %s131, 4
          %s141 = int_to_ptr.vmem [resolvable:$true] %s140
          %143 = dma.hbm_to_vmem [thread:$0]  %s138, 128, %s141, %s128
        $region20: #{tpu_custom_call.1} parent=15 // pred_fallthru
          _
        // Predicated region
        $region21: #{tpu_custom_call.1} parent=15 // pred_check
          %p144 = pneg %p73
        $region22: #{tpu_custom_call.1} parent=15 // pred_check_branch
          %146 = sbr.rel (%p144) target = $region24
        $region23: #{tpu_custom_call.1} parent=15 // pred_region
          %s147 = sand.u32 %s63, 1
          %s148 = scalar_lea.sflag [#allocation6], %s147
          %s149 = sand.u32 %s63, 1
          %s150 = smul.addr %s149, 8
          %s151 = scalar_lea.vmem [#allocation5], %s150
          %s152 = ssub.s32 %s17, 1
          %p153 = scmp.gt.s32.totalorder %s152, 0
          %s154 = scalar_select %p153, %s152, 0
          %s156 = ssub.s32 128, 128
          %157 = vsyncadd %s148, %s156
          %s158 = smul.addr %s154, 128
          %s159 = scalar_lea.hbm %s1, %s158
          %s161 = sshll.u32 %s151, 4
          %s162 = int_to_ptr.vmem [resolvable:$true] %s161
          %164 = dma.hbm_to_vmem [thread:$0]  %s159, 128, %s162, %s148
        $region24: #{tpu_custom_call.1} parent=15 // pred_fallthru
          _
      $region16: #{tpu_custom_call.1} parent=5 // pred_fallthru
        _
      %p165 = scmp.le.s32.totalorder 1, %s17
      %p166 = scmp.lt.s32.totalorder %s17, 3
      %p167 = pnand %p165, %p166
      %p168 = pneg %p167
      // Predicated region
      $region25: #{tpu_custom_call.1} parent=5 // pred_check
        _
      $region26: #{tpu_custom_call.1} parent=5 // pred_check_branch
        %170 = sbr.rel (%p167) target = $region28
      $region27: #{tpu_custom_call.1} parent=5 // pred_region
        %s171 = ssub.s32 %s17, 1
        %s172 = sand.u32 %s34, 1
        %s173 = scalar_lea.sflag [#allocation3], %s172
        %s174 = sand.u32 %s34, 1
        %s175 = smul.addr %s174, 8
        %s176 = scalar_lea.vmem [#allocation2], %s175
        // Predicated region
        $region29: #{tpu_custom_call.1} parent=27 // pred_check
          %p177 = pneg %p47
        $region30: #{tpu_custom_call.1} parent=27 // pred_check_branch
          %179 = sbr.rel (%p177) target = $region32
        $region31: #{tpu_custom_call.1} parent=27 // pred_region
          %180 = dma.done %s173, 128
        $region32: #{tpu_custom_call.1} parent=27 // pred_fallthru
          _
        %s181 = sand.u32 %s66, 1
        %s182 = scalar_lea.sflag [#allocation6], %s181
        %s183 = sand.u32 %s66, 1
        %s184 = smul.addr %s183, 8
        %s185 = scalar_lea.vmem [#allocation5], %s184
        // Predicated region
        $region33: #{tpu_custom_call.1} parent=27 // pred_check
          %p186 = pneg %p79
        $region34: #{tpu_custom_call.1} parent=27 // pred_check_branch
          %188 = sbr.rel (%p186) target = $region36
        $region35: #{tpu_custom_call.1} parent=27 // pred_region
          %189 = dma.done %s182, 128
        $region36: #{tpu_custom_call.1} parent=27 // pred_fallthru
          _
        %s190 = sand.u32 %s34, 1
        %s191 = scalar_lea.sflag [#allocation3], %s190
        %s192 = sand.u32 %s34, 1
        %s193 = smul.addr %s192, 8
        %s194 = scalar_lea.vmem [#allocation2], %s193
        %p195 = pneg %p47
        %p196 = pneg %p44
        %s197 = sand.u32 %s66, 1
        %s198 = scalar_lea.sflag [#allocation6], %s197
        %s199 = sand.u32 %s66, 1
        %s200 = smul.addr %s199, 8
        %s201 = scalar_lea.vmem [#allocation5], %s200
        %p202 = pneg %p79
        %p203 = pneg %p76
        %p204 = pneg %p105
        %p205 = pneg %p102
        %s206 = sand.u32 %s92, 1
        %s207 = scalar_lea.sflag [#allocation4], %s206
        %s208 = sand.u32 %s92, 1
        %s209 = smul.addr %s208, 8
        %s210 = scalar_lea.vmem [#allocation7], %s209
        %p211 = scmp.lt.s32.totalorder %s22, 0
        %s212 = scalar_select %p211, %s22, 0
        %s213 = ssub.s32 %s22, 1
        %p214 = scmp.gt.s32.totalorder %s213, 0
        %s215 = scalar_select %p214, %s213, 0
        %p216 = scmp.lt.s32.totalorder %s22, 1
        // Predicated region
        $region37: #{tpu_custom_call.1} parent=27 // pred_check
          %p217 = pneg %p216
        $region38: #{tpu_custom_call.1} parent=27 // pred_check_branch
          %219 = sbr.rel (%p217) target = $region40
        $region39: #{tpu_custom_call.1} parent=27 // pred_region
          %v220 = vld [vmem:[%s176] sm:$0xff]
          %vm221 = vcmask 261120
          %222 = vst.msk [vmem:[%s210] sm:$0xff] %vm221, %v220
        $region40: #{tpu_custom_call.1} parent=27 // pred_fallthru
          _
        %p223 = scmp.ge.s32.totalorder %s22, 1
        // Predicated region
        $region41: #{tpu_custom_call.1} parent=27 // pred_check
          %p224 = pneg %p223
        $region42: #{tpu_custom_call.1} parent=27 // pred_check_branch
          %226 = sbr.rel (%p224) target = $region44
        $region43: #{tpu_custom_call.1} parent=27 // pred_region
          %v227 = vld [vmem:[%s185] sm:$0xff]
          %vm228 = vcmask 261120
          %229 = vst.msk [vmem:[%s210] sm:$0xff] %vm228, %v227
        $region44: #{tpu_custom_call.1} parent=27 // pred_fallthru
          _
        %s230 = sand.u32 %s92, 1
        %s231 = scalar_lea.sflag [#allocation4], %s230
        %s232 = sand.u32 %s92, 1
        %s233 = smul.addr %s232, 8
        %s234 = scalar_lea.vmem [#allocation7], %s233
        // Predicated region
        $region45: #{tpu_custom_call.1} parent=27 // pred_check
          %p235 = pneg %p102
        $region46: #{tpu_custom_call.1} parent=27 // pred_check_branch
          %237 = sbr.rel (%p235) target = $region48
        $region47: #{tpu_custom_call.1} parent=27 // pred_region
          %s239 = ssub.s32 128, 128
          %240 = vsyncadd %s231, %s239
          %s241 = smul.addr %s22, 128
          %s242 = scalar_lea.hbm %s2, %s241
          %s244 = sshll.u32 %s234, 4
          %s245 = int_to_ptr.vmem [resolvable:$true] %s244
          %247 = dma.vmem_to_hbm [thread:$0]  %s245, 128, %s242, %s231
        $region48: #{tpu_custom_call.1} parent=27 // pred_fallthru
          _
      $region28: #{tpu_custom_call.1} parent=5 // pred_fallthru
        _
      %p248 = scmp.le.s32.totalorder 2, %s17
      // Predicated region
      $region49: #{tpu_custom_call.1} parent=5 // pred_check
        %p249 = pneg %p248
      $region50: #{tpu_custom_call.1} parent=5 // pred_check_branch
        %251 = sbr.rel (%p249) target = $region52
      $region51: #{tpu_custom_call.1} parent=5 // pred_region
        %s252 = ssub.s32 %s17, 2
        // Predicated region
        $region53: #{tpu_custom_call.1} parent=51 // pred_check
          %p253 = pneg %p108
        $region54: #{tpu_custom_call.1} parent=51 // pred_check_branch
          %255 = sbr.rel (%p253) target = $region56
        $region55: #{tpu_custom_call.1} parent=51 // pred_region
          %s256 = sand.u32 %s93, 1
          %s257 = scalar_lea.sflag [#allocation4], %s256
          %s258 = sand.u32 %s93, 1
          %s259 = smul.addr %s258, 8
          %s260 = scalar_lea.vmem [#allocation7], %s259
          %261 = dma.done %s257, 128
        $region56: #{tpu_custom_call.1} parent=51 // pred_fallthru
          _
      $region52: #{tpu_custom_call.1} parent=5 // pred_fallthru
        _
    $region6: #{tpu_custom_call.1} parent=1 // loop_footer
      %s21 = sadd.s32 1, %s17
    $region7: #{tpu_custom_call.1} parent=1 // loop_footer_branch
      %16 = sbr.rel target = $region3
    $region8: #{tpu_custom_call.1} parent=1 // loop_exit
      _
    %262 = vsyncpa [#allocation3], 1
    %s263 = scalar_lea.sflag [#allocation3], 1
    %264 = vsyncpa %s263, 1
    %265 = vsyncpa [#allocation6], 1
    %s266 = scalar_lea.sflag [#allocation6], 1
    %267 = vsyncpa %s266, 1
    %268 = vsyncpa [#allocation4], 1
    %s269 = scalar_lea.sflag [#allocation4], 1
    %270 = vsyncpa %s269, 1

</llo_original>
